<compile_context>
chip_gen: v7x
topology: tpu7x:2x2x1
jax: 0.10.0
libtpu: 0.0.40
codegen_flags: <defaults>
</compile_context>

<pallas_src>
from functools import partial

import jax
import jax.numpy as jnp
from jax.experimental import pallas as pl
from jax.experimental.pallas import tpu as pltpu


def linearnn_head_kernel(h_last_ref, h_prev_ref, os_ref, wt_ref, b_ref, out_ref):
    # x = mean(stack([hs[-1], hs[-2], os]), axis=0); Dropout(p=0.5) -> identity
    # in eval mode.  Accumulate in f32 even if inputs arrive as bf16.
    x = (h_last_ref[...].astype(jnp.float32)
         + h_prev_ref[...].astype(jnp.float32)
         + os_ref[...].astype(jnp.float32)) * (1.0 / 3.0)            # [TM, H]
    # fc: W^T [2, H] contracted with x [TM, H] over H -> [2, TM] (lane-dense).
    logits = jax.lax.dot_general(
        wt_ref[...].astype(jnp.float32), x,
        dimension_numbers=(((1,), (1,)), ((), ())),
        preferred_element_type=jnp.float32)                           # [2, TM]
    out_ref[...] = logits + b_ref[...]                                # bias (2,1)


@partial(jax.jit, static_argnames=("block_m",))
def linearnn_head(hs_last, hs_prev, os, w, b, *, block_m=1024):
    """hs_last, hs_prev, os: [B, S, H] (f32/bf16); w: [H, 2]; b: [2].

    Returns (start_logits, end_logits), each [B, S] float32.
    """
    B, S, H = hs_last.shape
    M = B * S

    # Tile along M.  Cap so 3 inputs x 2 pipeline buffers stay ~<= 40 MiB VMEM.
    itemsize = jnp.dtype(hs_last.dtype).itemsize
    tm_cap = ((40 << 20) // (6 * H * itemsize)) // 128 * 128
    tm = max(128, min((block_m // 128) * 128, tm_cap))
    if M <= tm:
        tm = M                      # single full-extent block (any M allowed)
    grid = (pl.cdiv(M, tm),)        # ragged last tile handled by Pallas masking

    h1 = hs_last.reshape(M, H)
    h2 = hs_prev.reshape(M, H)
    h3 = os.reshape(M, H)
    wt = jnp.transpose(w).astype(jnp.float32)        # [2, H]
    b2 = b.reshape(2, 1).astype(jnp.float32)         # [2, 1]

    vmem_needed = (3 * 2 * tm * H * itemsize         # double-buffered input tiles
                   + 2 * 2 * tm * 4                  # double-buffered [2, tm] out
                   + 2 * H * 4 + 2 * 4)              # weight + bias
    vmem_limit = int(min(max(vmem_needed + (2 << 20), 16 << 20), 56 << 20))

    out = pl.pallas_call(
        linearnn_head_kernel,
        out_shape=jax.ShapeDtypeStruct((2, M), jnp.float32),
        grid=grid,
        in_specs=[
            pl.BlockSpec((tm, H), lambda i: (i, 0)),
            pl.BlockSpec((tm, H), lambda i: (i, 0)),
            pl.BlockSpec((tm, H), lambda i: (i, 0)),
            pl.BlockSpec((2, H), lambda i: (0, 0)),   # weight: same block every step
            pl.BlockSpec((2, 1), lambda i: (0, 0)),   # bias
        ],
        out_specs=pl.BlockSpec((2, tm), lambda i: (0, i)),
        compiler_params=pltpu.CompilerParams(
            dimension_semantics=("parallel",),
            vmem_limit_bytes=vmem_limit,
        ),
    )(h1, h2, h3, wt, b2)

    start_logits = out[0].reshape(B, S)
    end_logits = out[1].reshape(B, S)
    return start_logits, end_logits


def _reference(hs_last, hs_prev, os, w, b):
    x = (hs_last.astype(jnp.float32) + hs_prev.astype(jnp.float32)
         + os.astype(jnp.float32)) / 3.0
    logits = jnp.einsum("bsh,ht->bst", x, w.astype(jnp.float32)) + b
    return logits[..., 0], logits[..., 1]


if __name__ == "__main__":
    # Small synthetic shapes: batch=2, seq=8, hidden=32.
    B, S, H = 2, 8, 32

    key = jax.random.PRNGKey(0)
    k1, k2, k3, kw, kb = jax.random.split(key, 5)

    # Synthesized RoBERTa outputs (stand-ins for hs[-1], hs[-2], os).
    hs_last = jax.random.normal(k1, (B, S, H), dtype=jnp.float32)
    hs_prev = jax.random.normal(k2, (B, S, H), dtype=jnp.float32)
    os_ = jax.random.normal(k3, (B, S, H), dtype=jnp.float32)

    # fc params: nn.init.normal_(weight, std=0.02); nn.init.normal_(bias, 0).
    # Stored as [H, 2] so the head computes x @ W (+ b).
    fc_w = 0.02 * jax.random.normal(kw, (H, 2), dtype=jnp.float32)
    fc_b = jax.random.normal(kb, (2,), dtype=jnp.float32)

    start_logits, end_logits = linearnn_head(hs_last, hs_prev, os_, fc_w, fc_b)
    jax.block_until_ready((start_logits, end_logits))
    s_ref, e_ref = _reference(hs_last, hs_prev, os_, fc_w, fc_b)
    assert start_logits.shape == (B, S) and end_logits.shape == (B, S)
    assert jnp.allclose(start_logits, s_ref, atol=1e-4, rtol=1e-4)
    assert jnp.allclose(end_logits, e_ref, atol=1e-4, rtol=1e-4)

    # Tiny / ragged M (M = 3, not a multiple of 8): single full-extent block.
    Bo, So = 1, 3
    ho1 = jax.random.normal(k1, (Bo, So, H), dtype=jnp.float32)
    ho2 = jax.random.normal(k2, (Bo, So, H), dtype=jnp.float32)
    ho3 = jax.random.normal(k3, (Bo, So, H), dtype=jnp.float32)
    so, eo = linearnn_head(ho1, ho2, ho3, fc_w, fc_b)
    jax.block_until_ready((so, eo))
    so_ref, eo_ref = _reference(ho1, ho2, ho3, fc_w, fc_b)
    assert jnp.allclose(so, so_ref, atol=1e-4, rtol=1e-4)
    assert jnp.allclose(eo, eo_ref, atol=1e-4, rtol=1e-4)

    # Multi-tile + boundary-block path: M = 144 with TM = 128 (last tile ragged).
    Bb, Sb = 2, 72
    hb1 = jax.random.normal(k1, (Bb, Sb, H), dtype=jnp.float32)
    hb2 = jax.random.normal(k2, (Bb, Sb, H), dtype=jnp.float32)
    hb3 = jax.random.normal(k3, (Bb, Sb, H), dtype=jnp.float32)
    sb, eb = linearnn_head(hb1, hb2, hb3, fc_w, fc_b, block_m=128)
    jax.block_until_ready((sb, eb))
    sb_ref, eb_ref = _reference(hb1, hb2, hb3, fc_w, fc_b)
    assert jnp.allclose(sb, sb_ref, atol=1e-4, rtol=1e-4)
    assert jnp.allclose(eb, eb_ref, atol=1e-4, rtol=1e-4)

    print("KERNEL_OK")
</pallas_src>

<mosaic_0001>
module attributes {stable_mosaic.version = 11 : i64} {
  func.func @linearnn_head_kernel(%arg0: i32, %arg1: memref<16x32xf32, #tpu.memory_space<vmem>>, %arg2: memref<16x32xf32, #tpu.memory_space<vmem>>, %arg3: memref<16x32xf32, #tpu.memory_space<vmem>>, %arg4: memref<2x32xf32, #tpu.memory_space<vmem>>, %arg5: memref<2x1xf32, #tpu.memory_space<vmem>>, %arg6: memref<2x16xf32, #tpu.memory_space<vmem>>) attributes {dimension_semantics = [#tpu.dimension_semantics<parallel>], iteration_bounds = array<i64: 1>, scalar_prefetch = 0 : i64, scratch_operands = 0 : i64, tpu.core_type = #tpu.core_type<tc>, window_params = [{transform_indices = @transform_0, window_bounds = array<i64: 16, 32>}, {transform_indices = @transform_1, window_bounds = array<i64: 16, 32>}, {transform_indices = @transform_2, window_bounds = array<i64: 16, 32>}, {pipeline_mode = #tpu.pipeline_mode<synchronous>, transform_indices = @transform_3, window_bounds = array<i64: 2, 32>}, {pipeline_mode = #tpu.pipeline_mode<synchronous>, transform_indices = @transform_4, window_bounds = array<i64: 2, 1>}, {transform_indices = @transform_5, window_bounds = array<i64: 2, 16>}]} {
    %c0 = arith.constant 0 : index
    %c0_0 = arith.constant 0 : index
    %0 = vector.load %arg1[%c0, %c0_0] : memref<16x32xf32, #tpu.memory_space<vmem>>, vector<16x32xf32>
    %c0_1 = arith.constant 0 : index
    %c0_2 = arith.constant 0 : index
    %1 = vector.load %arg2[%c0_1, %c0_2] : memref<16x32xf32, #tpu.memory_space<vmem>>, vector<16x32xf32>
    %2 = arith.addf %0, %1 : vector<16x32xf32>
    %c0_3 = arith.constant 0 : index
    %c0_4 = arith.constant 0 : index
    %3 = vector.load %arg3[%c0_3, %c0_4] : memref<16x32xf32, #tpu.memory_space<vmem>>, vector<16x32xf32>
    %4 = arith.addf %2, %3 : vector<16x32xf32>
    %cst = arith.constant 0.333333343 : f32
    %5 = vector.broadcast %cst : f32 to vector<16x32xf32>
    %6 = arith.mulf %4, %5 : vector<16x32xf32>
    %c0_5 = arith.constant 0 : index
    %c0_6 = arith.constant 0 : index
    %7 = vector.load %arg4[%c0_5, %c0_6] : memref<2x32xf32, #tpu.memory_space<vmem>>, vector<2x32xf32>
    %cst_7 = arith.constant dense<0.000000e+00> : vector<2x16xf32>
    %8 = tpu.matmul %7, %6, %cst_7 {dimension_numbers = #tpu.dot_dimension_numbers<[1], [1], [0], [0], [0, 0, 1, 0], [], []>} : vector<2x32xf32>, vector<16x32xf32>, vector<2x16xf32> -> vector<2x16xf32>
    %c0_8 = arith.constant 0 : index
    %c0_9 = arith.constant 0 : index
    %9 = vector.load %arg5[%c0_8, %c0_9] : memref<2x1xf32, #tpu.memory_space<vmem>>, vector<2x1xf32>
    %10 = vector.broadcast %9 : vector<2x1xf32> to vector<2x16xf32>
    %11 = arith.addf %8, %10 : vector<2x16xf32>
    %c0_10 = arith.constant 0 : index
    %c0_11 = arith.constant 0 : index
    %12 = vector.load %arg6[%c0_10, %c0_11] : memref<2x16xf32, #tpu.memory_space<vmem>>, vector<2x16xf32>
    tpu.vector_store %arg6[%c0_10, %c0_11], %11 {strides = array<i32>} : memref<2x16xf32, #tpu.memory_space<vmem>>, vector<2x16xf32>,
    return
  }
  func.func @transform_0(%arg0: i32) -> (i32, i32) {
    %c0_i32 = arith.constant 0 : i32
    %c0_i32_0 = arith.constant 0 : i32
    return %arg0, %c0_i32 : i32, i32
  }
  func.func @transform_1(%arg0: i32) -> (i32, i32) {
    %c0_i32 = arith.constant 0 : i32
    %c0_i32_0 = arith.constant 0 : i32
    return %arg0, %c0_i32 : i32, i32
  }
  func.func @transform_2(%arg0: i32) -> (i32, i32) {
    %c0_i32 = arith.constant 0 : i32
    %c0_i32_0 = arith.constant 0 : i32
    return %arg0, %c0_i32 : i32, i32
  }
  func.func @transform_3(%arg0: i32) -> (i32, i32) {
    %c0_i32 = arith.constant 0 : i32
    %c0_i32_0 = arith.constant 0 : i32
    %c0_i32_1 = arith.constant 0 : i32
    return %c0_i32, %c0_i32_0 : i32, i32
  }
  func.func @transform_4(%arg0: i32) -> (i32, i32) {
    %c0_i32 = arith.constant 0 : i32
    %c0_i32_0 = arith.constant 0 : i32
    %c0_i32_1 = arith.constant 0 : i32
    return %c0_i32, %c0_i32_0 : i32, i32
  }
  func.func @transform_5(%arg0: i32) -> (i32, i32) {
    %c0_i32 = arith.constant 0 : i32
    %c0_i32_0 = arith.constant 0 : i32
    return %c0_i32, %arg0 : i32, i32
  }
}

</mosaic_0001>

<llo_original>
// kernel: squeeze.3
$region0: #{squeeze.3}
  %s0 = inlined_call_operand.vmem [shape: f32[16], index: 0, kind: input, shape index: {}]
  %s1 = inlined_call_operand.hbm [shape: f32[2,8], index: 1, kind: output, shape index: {}]
  $region1: #{squeeze.3} parent=0
    #allocation0 [shape = 'u8[1024]{0}', space=vmem, size = 0x400, scoped, tag = 'operand span for operand 1']
    #allocation1 [shape = 's32[1]{0}', space=sflag, size = 0x4, scoped, tag = 'scoped memory for squeeze.3']
    #allocation2 [shape = 'u8[4096]{0}', space=vmem, size = 0x1000, scoped, tag = 'scoped mem for output reshape']
    #allocation3 [shape = 'u8[4096]{0}', space=vmem, size = 0x1000, scoped, tag = 'scoped mem for input reshape']
    %2 = vsyncpa [#allocation1], 0
    %s4 = sshllo.u32 0, 1
    %v5 = vld [vmem:[%s0] sm:%s4]
    %6 = vst [vmem:[#allocation3] sm:%s4] %v5
    %v7 = vld [vmem:[#allocation3] sm:$0x1]
    %vm8 = vcmask 64512
    %9 = vst.msk [vmem:[#allocation2] sm:$0x1] %vm8, %v7
    %v10 = vld [vmem:[#allocation3] sm:$0x1]
    %11 = vrot.lane.b32.xlu0 %v10, 120
    %v12 = vpop.permute.xlu0 %11
    %vm13 = vcmask 64512
    %s14 = scalar_lea.vmem [#allocation2], 1
    %15 = vst.msk [vmem:[%s14] sm:$0x1] %vm13, %v12
    %s17 = sshllo.u32 0, 2
    %v19 = vld [vmem:[#allocation2] sm:%s17]
    %s20 = sshllo.u32 0, 2
    %21 = vst [vmem:[#allocation0] sm:%s20] %v19
    %s23 = ssub.s32 32, 32
    %24 = vsyncadd [#allocation1], %s23
    %s26 = sshll.u32 [#allocation0], 4
    %s27 = int_to_ptr.vmem [resolvable:$true] %s26
    %29 = dma.vmem_to_hbm [thread:$0]  %s27, 32, %s1, [#allocation1]
    %30 = dma.done [#allocation1], 32
    %31 = vsyncpa [#allocation1], 1

// kernel: linearnn_head.1
$region0: #{linearnn_head.1}
  #allocation0 [shape = 'u32[]', space=smem, size = 0x4, offset = 0x4, fixed_abs, tag = 'smem constant byte address 0x4 - core index']
  #allocation1 [shape = 'u32[144,128]{1,0:T(1,128)}', space=vmem, size = 0x12000, scoped, tag = 'internal scratch']
  %s0 = inlined_call_operand.vmem [shape: f32[16,32], index: 0, kind: input, shape index: {}]
  %s1 = inlined_call_operand.hbm [shape: f32[16,32], index: 1, kind: input, shape index: {}]
  %s2 = inlined_call_operand.hbm [shape: f32[16,32], index: 2, kind: input, shape index: {}]
  %s3 = inlined_call_operand.vmem [shape: f32[2,32], index: 3, kind: input, shape index: {}]
  %s4 = inlined_call_operand.vmem [shape: f32[2,1], index: 4, kind: input, shape index: {}]
  %s5 = inlined_call_operand.vmem [shape: f32[2,16], index: 5, kind: output, shape index: {}]
  %s6 = sld [smem:[#allocation0]]
  $region38: #{linearnn_head.1} parent=0
    _
  %s8 = ssub.s32 1, %s6
  %s9 = scalar_select 0, %s8, %s6
  $region1: #{linearnn_head.1} parent=0
    #allocation2 [shape = 'u8[8192]{0}', space=vmem, size = 0x2000, scoped, tag = 'input window, operand 1, single buffered']
    #allocation3 [shape = 's32[1]{0}', space=sflag, size = 0x4, scoped, tag = 'scoped memory for linearnn_head.1']
    #allocation4 [shape = 'u8[8192]{0}', space=vmem, size = 0x2000, scoped, tag = 'input window, operand 2, single buffered']
    #allocation5 [shape = 's32[1]{0}', space=sflag, size = 0x4, scoped, tag = 'scoped memory for linearnn_head.1']
    %10 = vsyncpa [#allocation3], 0
    %11 = vsyncpa [#allocation5], 0
    // Predicated region
    $region2: #{linearnn_head.1} parent=1 // pred_check
      _
    $region3: #{linearnn_head.1} parent=1 // pred_check_branch
      %13 = sbr.rel (0) target = $region5
    $region4: #{linearnn_head.1} parent=1 // pred_region
      _
    $region5: #{linearnn_head.1} parent=1 // pred_fallthru
      _
    // Predicated region
    $region6: #{linearnn_head.1} parent=1 // pred_check
      _
    $region7: #{linearnn_head.1} parent=1 // pred_check_branch
      %15 = sbr.rel (0) target = $region9
    $region8: #{linearnn_head.1} parent=1 // pred_region
      %s17 = ssub.s32 256, 256
      %18 = vsyncadd [#allocation3], %s17
      %s19 = sshll.u32 [#allocation2], 4
      %s20 = int_to_ptr.vmem [resolvable:$true] %s19
      %25 = dma.hbm_to_vmem [thread:$0]  %s1, 256, %s20, [#allocation3], 128, 128, 8
    $region9: #{linearnn_head.1} parent=1 // pred_fallthru
      _
    // Predicated region
    $region10: #{linearnn_head.1} parent=1 // pred_check
      _
    $region11: #{linearnn_head.1} parent=1 // pred_check_branch
      %27 = sbr.rel (0) target = $region13
    $region12: #{linearnn_head.1} parent=1 // pred_region
      %s29 = ssub.s32 256, 256
      %30 = vsyncadd [#allocation5], %s29
      %s31 = sshll.u32 [#allocation4], 4
      %s32 = int_to_ptr.vmem [resolvable:$true] %s31
      %37 = dma.hbm_to_vmem [thread:$0]  %s2, 256, %s32, [#allocation5], 128, 128, 8
    $region13: #{linearnn_head.1} parent=1 // pred_fallthru
      _
    // Predicated region
    $region14: #{linearnn_head.1} parent=1 // pred_check
      _
    $region15: #{linearnn_head.1} parent=1 // pred_check_branch
      %39 = sbr.rel (0) target = $region17
    $region16: #{linearnn_head.1} parent=1 // pred_region
      _
    $region17: #{linearnn_head.1} parent=1 // pred_fallthru
      _
    // Predicated region
    $region18: #{linearnn_head.1} parent=1 // pred_check
      _
    $region19: #{linearnn_head.1} parent=1 // pred_check_branch
      %41 = sbr.rel (0) target = $region21
    $region20: #{linearnn_head.1} parent=1 // pred_region
      _
    $region21: #{linearnn_head.1} parent=1 // pred_fallthru
      _
    // Predicated region
    $region22: #{linearnn_head.1} parent=1 // pred_check
      _
    $region23: #{linearnn_head.1} parent=1 // pred_check_branch
      %43 = sbr.rel (0) target = $region25
    $region24: #{linearnn_head.1} parent=1 // pred_region
      %44 = dma.done [#allocation3], 256
    $region25: #{linearnn_head.1} parent=1 // pred_fallthru
      _
    // Predicated region
    $region26: #{linearnn_head.1} parent=1 // pred_check
      _
    $region27: #{linearnn_head.1} parent=1 // pred_check_branch
      %46 = sbr.rel (0) target = $region29
    $region28: #{linearnn_head.1} parent=1 // pred_region
      %47 = dma.done [#allocation5], 256
    $region29: #{linearnn_head.1} parent=1 // pred_fallthru
      _
    %v48 = vld [vmem:[%s0] sm:$0xff]
    %v49 = vld [vmem:[%s0 + $0x8] sm:$0xff]
    %v50 = vld [vmem:[#allocation2] sm:$0xff]
    %v51 = vld [vmem:[#allocation2 + $0x8] sm:$0xff]
    %v52 = vadd.f32 %v48, %v50
    %v53 = vadd.f32 %v49, %v51
    %v54 = vld [vmem:[#allocation4] sm:$0xff]
    %v55 = vld [vmem:[#allocation4 + $0x8] sm:$0xff]
    %v56 = vadd.f32 %v52, %v54
    %v57 = vadd.f32 %v53, %v55
    %v58 = vmul.f32 %v56, 0.33333334
    %v59 = vmul.f32 %v57, 0.33333334
    %v60 = vld [vmem:[%s3] sm:$0x3]
    %v61 = vld [vmem:[%s4] sm:$0x3]
    %63 = vset.pattern.permute.xlu0 0
    %64 = vperm.xlu0 %63, %v61
    %v65 = vpop.permute.xlu0 %64
    %vm67 = vcmask 261120
    %v69 = vsel %vm67, %v60, 0
    %v72 = vsel %vm67, %v58, 0
    %v75 = vsel %vm67, %v59, 0
    %77 = vmatprep.subr.mxu0 0.0
    %78 = vmatpush1.xpose.msra.mxu0 %v72
    %79 = vmatprep.subr.mxu0 0.0
    %80 = vmatpush1.xpose.msra.mxu0 %v75
    %81 = vmatprep.subr.mxu0 0.0
    %82 = vmatpush1.xpose.msra.mxu0 0.0
    %83 = vmatprep.subr.mxu0 0.0
    %84 = vmatpush1.xpose.msra.mxu0 0.0
    %85 = vmatprep.subr.mxu0 0.0
    %86 = vmatpush1.xpose.msra.mxu0 0.0
    %87 = vmatprep.subr.mxu0 0.0
    %88 = vmatpush1.xpose.msra.mxu0 0.0
    %89 = vmatprep.subr.mxu0 0.0
    %90 = vmatpush1.xpose.msra.mxu0 0.0
    %91 = vmatprep.subr.mxu0 0.0
    %92 = vmatpush1.xpose.msra.mxu0 0.0
    %93 = vmatprep.subr.mxu0 0.0
    %94 = vmatpush1.xpose.msra.mxu0 0.0
    %95 = vmatprep.subr.mxu0 0.0
    %96 = vmatpush1.xpose.msra.mxu0 0.0
    %97 = vmatprep.subr.mxu0 0.0
    %98 = vmatpush1.xpose.msra.mxu0 0.0
    %99 = vmatprep.subr.mxu0 0.0
    %100 = vmatpush1.xpose.msra.mxu0 0.0
    %101 = vmatprep.subr.mxu0 0.0
    %102 = vmatpush1.xpose.msra.mxu0 0.0
    %103 = vmatprep.subr.mxu0 0.0
    %104 = vmatpush1.xpose.msra.mxu0 0.0
    %105 = vmatprep.subr.mxu0 0.0
    %106 = vmatpush1.xpose.msra.mxu0 0.0
    %107 = vmatprep.subr.mxu0 0.0
    %108 = vmatpush1.xpose.msra.mxu0 0.0
    %109 = vmatprep.subr.mxu0 0.0
    %110 = vmatpush1.xpose.msra.mxu0 0.0
    %111 = vmatprep.subr.mxu0 0.0
    %112 = vmatpush1.xpose.msra.mxu0 0.0
    %113 = vmatprep.subr.mxu0 0.0
    %114 = vmatpush1.xpose.msra.mxu0 0.0
    %115 = vmatprep.subr.mxu0 0.0
    %116 = vmatpush1.xpose.msra.mxu0 0.0
    %117 = vmatprep.subr.mxu0 0.0
    %118 = vmatpush1.xpose.msra.mxu0 0.0
    %119 = vmatprep.subr.mxu0 0.0
    %120 = vmatpush1.xpose.msra.mxu0 0.0
    %121 = vmatprep.subr.mxu0 0.0
    %122 = vmatpush1.xpose.msra.mxu0 0.0
    %123 = vmatprep.subr.mxu0 0.0
    %124 = vmatpush1.xpose.msra.mxu0 0.0
    %125 = vmatprep.subr.mxu0 0.0
    %126 = vmatpush1.xpose.msra.mxu0 0.0
    %127 = vmatprep.subr.mxu0 0.0
    %128 = vmatpush1.xpose.msra.mxu0 0.0
    %129 = vmatprep.subr.mxu0 0.0
    %130 = vmatpush1.xpose.msra.mxu0 0.0
    %131 = vmatprep.subr.mxu0 0.0
    %132 = vmatpush1.xpose.msra.mxu0 0.0
    %133 = vmatprep.subr.mxu0 0.0
    %134 = vmatpush1.xpose.msra.mxu0 0.0
    %135 = vmatprep.subr.mxu0 0.0
    %136 = vmatpush1.xpose.msra.mxu0 0.0
    %137 = vmatprep.subr.mxu0 0.0
    %138 = vmatpush1.xpose.msra.mxu0 0.0
    %139 = vmatprep.subr.mxu0 0.0
    %140 = vmatpush1.xpose.msra.mxu0 0.0
    %141 = vmatprep.mubr.f32.mxu0 0.0
    %142 = vmatmul.mubr.f32.gmra.mrb[0].mxu0 %v69
    %v143 = vpop.f32.mrb[0].mxu0
    %v144 = vadd.f32 %v65, %v143
    %v145 = vpop.f32.mrb[0].mxu0
    %146 = vdwg.mxu0
    %vm147 = vcmask 123904
    %148 = vst.msk [vmem:[%s5] sm:$0x3] %vm147, %v144
    // Predicated region
    $region30: #{linearnn_head.1} parent=1 // pred_check
      _
    $region31: #{linearnn_head.1} parent=1 // pred_check_branch
      %150 = sbr.rel (0) target = $region33
    $region32: #{linearnn_head.1} parent=1 // pred_region
      _
    $region33: #{linearnn_head.1} parent=1 // pred_fallthru
      _
    // Predicated region
    $region34: #{linearnn_head.1} parent=1 // pred_check
      _
    $region35: #{linearnn_head.1} parent=1 // pred_check_branch
      %152 = sbr.rel (0) target = $region37
    $region36: #{linearnn_head.1} parent=1 // pred_region
      _
    $region37: #{linearnn_head.1} parent=1 // pred_fallthru
      _
    %153 = vsyncpa [#allocation3], 1
    %154 = vsyncpa [#allocation5], 1

</llo_original>
